<compile_context>
chip_gen: v5e
topology: v5e:2x2
jax: 0.10.0
libtpu: 0.0.40
codegen_flags: <defaults>
</compile_context>

<pallas_src>
import jax
import jax.numpy as jnp
from jax.experimental import pallas as pl
from jax.experimental.pallas import tpu as pltpu

STATE_SIZE = 4      # CartPole-v0 observation dim
ACTION_SIZE = 2     # CartPole-v0 action dim
H1 = 128
H2 = 256

# Row layout of the packed "smalls" array (f32, shape [7, H2]):
#   rows 0..3, lanes 0..127 : W1  (stored [in, out], i.e. y = x @ W1)
#   row  4,    lanes 0..127 : b1
#   row  5,    lanes 0..255 : b2
#   row  6,    lanes 0..1   : b3
_ROW_B1 = STATE_SIZE          # 4
_ROW_B2 = STATE_SIZE + 1      # 5
_ROW_B3 = STATE_SIZE + 2      # 6
_N_SMALL_ROWS = STATE_SIZE + 3  # 7

# Batch rows per grid step (only used when B > _TILE_B).
_TILE_B = 512


def _actor_kernel(x_ref, sm_ref, w2_ref, w3_ref, o_ref):
    x = x_ref[...]                                    # [tb, 4] f32

    # ---- layer 1 on the VPU: K=4 would waste >95% of the MXU ----
    h1 = sm_ref[_ROW_B1:_ROW_B1 + 1, 0:H1]            # b1, [1, 128], broadcasts
    for k in range(STATE_SIZE):                       # static unroll (4 FMAs)
        h1 = h1 + x[:, k:k + 1] * sm_ref[k:k + 1, 0:H1]
    h1 = jnp.maximum(h1, 0.0)                         # [tb, 128] f32

    # ---- layer 2 on the MXU: bf16 operands, f32 accumulate ----
    h2 = jnp.dot(h1.astype(jnp.bfloat16), w2_ref[...],
                 preferred_element_type=jnp.float32)
    h2 = jnp.maximum(h2 + sm_ref[_ROW_B2:_ROW_B2 + 1, :], 0.0)   # [tb, 256] f32

    # ---- layer 3 (logits) ----
    logits = jnp.dot(h2.astype(jnp.bfloat16), w3_ref[...],
                     preferred_element_type=jnp.float32)
    logits = logits + sm_ref[_ROW_B3:_ROW_B3 + 1, 0:ACTION_SIZE]  # [tb, 2] f32

    # ---- numerically stable softmax; approx reciprocal rides the EUP slot ----
    m = jnp.max(logits, axis=-1, keepdims=True)
    e = jnp.exp(logits - m)
    denom = jnp.sum(e, axis=-1, keepdims=True)
    o_ref[...] = (e * pl.reciprocal(denom, approx=True)).astype(o_ref.dtype)


def actor_forward(state, smalls, w2_bf16, w3_bf16):
    """state: [B, STATE_SIZE] f32 -> probs: [B, ACTION_SIZE] f32."""
    B = state.shape[0]

    if B <= _TILE_B:
        tile_b, b_pad = B, B                  # single block == full array dims
    else:
        tile_b = _TILE_B
        b_pad = pl.cdiv(B, tile_b) * tile_b
        if b_pad != B:
            state = jnp.pad(state, ((0, b_pad - B), (0, 0)))

    grid = (b_pad // tile_b,)

    out = pl.pallas_call(
        _actor_kernel,
        out_shape=jax.ShapeDtypeStruct((b_pad, ACTION_SIZE), jnp.float32),
        grid=grid,
        in_specs=[
            pl.BlockSpec((tile_b, STATE_SIZE), lambda i: (i, 0)),
            pl.BlockSpec(smalls.shape, lambda i: (0, 0)),     # weights stay resident
            pl.BlockSpec(w2_bf16.shape, lambda i: (0, 0)),
            pl.BlockSpec(w3_bf16.shape, lambda i: (0, 0)),
        ],
        out_specs=pl.BlockSpec((tile_b, ACTION_SIZE), lambda i: (i, 0)),
        compiler_params=pltpu.CompilerParams(
            dimension_semantics=("parallel",)),               # shard batch across TCs
    )(state, smalls, w2_bf16, w3_bf16)

    return out[:B]


def init_params(key):
    """torch.nn.Linear default init (U[-1/sqrt(fan_in), 1/sqrt(fan_in)]).
    Weights stored as [in, out] (transposed vs torch's [out, in])."""
    def linear(k, fan_in, fan_out):
        kw, kb = jax.random.split(k)
        bound = 1.0 / jnp.sqrt(jnp.float32(fan_in))
        w = jax.random.uniform(kw, (fan_in, fan_out), jnp.float32, -bound, bound)
        b = jax.random.uniform(kb, (fan_out,), jnp.float32, -bound, bound)
        return w, b

    k1, k2, k3 = jax.random.split(key, 3)
    return (linear(k1, STATE_SIZE, H1),
            linear(k2, H1, H2),
            linear(k3, H2, ACTION_SIZE))


def pack_params(layers):
    """Pack (w1, b1, b2, b3) into one small f32 array; cast w2/w3 to bf16."""
    (w1, b1), (w2, b2), (w3, b3) = layers
    smalls = jnp.zeros((_N_SMALL_ROWS, H2), jnp.float32)
    smalls = smalls.at[0:STATE_SIZE, 0:H1].set(w1)
    smalls = smalls.at[_ROW_B1, 0:H1].set(b1)
    smalls = smalls.at[_ROW_B2, :].set(b2)
    smalls = smalls.at[_ROW_B3, 0:ACTION_SIZE].set(b3)
    return smalls, w2.astype(jnp.bfloat16), w3.astype(jnp.bfloat16)


if __name__ == "__main__":
    key = jax.random.PRNGKey(0)
    k_params, k_state = jax.random.split(key)

    layers = init_params(k_params)
    smalls, w2b, w3b = pack_params(layers)

    B = 8
    state = jax.random.normal(k_state, (B, STATE_SIZE), jnp.float32)

    probs = actor_forward(state, smalls, w2b, w3b)
    probs = jax.block_until_ready(probs)

    # Pure-JAX reference using the same bf16-weight / f32-accumulate recipe.
    (w1, b1), (w2, b2), (w3, b3) = layers
    h1 = jnp.maximum(state @ w1 + b1, 0.0)
    h2 = jnp.maximum(
        jnp.dot(h1.astype(jnp.bfloat16), w2b, preferred_element_type=jnp.float32) + b2,
        0.0)
    logits = jnp.dot(h2.astype(jnp.bfloat16), w3b,
                     preferred_element_type=jnp.float32) + b3
    ref = jax.nn.softmax(logits, axis=-1)

    assert probs.shape == (B, ACTION_SIZE)
    assert bool(jnp.all(jnp.isfinite(probs)))
    # approx reciprocal -> row sums equal 1 only to ~1e-3
    assert bool(jnp.allclose(jnp.sum(probs, axis=-1), 1.0, atol=5e-3))
    assert bool(jnp.allclose(probs, ref, atol=5e-3))

    print("KERNEL_OK")
</pallas_src>

<mosaic_0001>
module attributes {stable_mosaic.version = 11 : i64} {
  func.func @_actor_kernel(%arg0: i32, %arg1: memref<8x4xf32, #tpu.memory_space<vmem>>, %arg2: memref<7x256xf32, #tpu.memory_space<vmem>>, %arg3: memref<128x256xbf16, #tpu.memory_space<vmem>>, %arg4: memref<256x2xbf16, #tpu.memory_space<vmem>>, %arg5: memref<8x2xf32, #tpu.memory_space<vmem>>) attributes {dimension_semantics = [#tpu.dimension_semantics<parallel>], iteration_bounds = array<i64: 1>, scalar_prefetch = 0 : i64, scratch_operands = 0 : i64, tpu.core_type = #tpu.core_type<tc>, window_params = [{transform_indices = @transform_0, window_bounds = array<i64: 8, 4>}, {pipeline_mode = #tpu.pipeline_mode<synchronous>, transform_indices = @transform_1, window_bounds = array<i64: 7, 256>}, {pipeline_mode = #tpu.pipeline_mode<synchronous>, transform_indices = @transform_2, window_bounds = array<i64: 128, 256>}, {pipeline_mode = #tpu.pipeline_mode<synchronous>, transform_indices = @transform_3, window_bounds = array<i64: 256, 2>}, {transform_indices = @transform_4, window_bounds = array<i64: 8, 2>}]} {
    %c0 = arith.constant 0 : index
    %c0_0 = arith.constant 0 : index
    %0 = vector.load %arg1[%c0, %c0_0] : memref<8x4xf32, #tpu.memory_space<vmem>>, vector<8x4xf32>
    %c4 = arith.constant 4 : index
    %c0_1 = arith.constant 0 : index
    %1 = vector.load %arg2[%c4, %c0_1] : memref<7x256xf32, #tpu.memory_space<vmem>>, vector<1x128xf32>
    %2 = vector.extract_strided_slice %0 {offsets = [0, 0], sizes = [8, 1], strides = [1, 1]} : vector<8x4xf32> to vector<8x1xf32>
    %c0_2 = arith.constant 0 : index
    %c0_3 = arith.constant 0 : index
    %3 = vector.load %arg2[%c0_2, %c0_3] : memref<7x256xf32, #tpu.memory_space<vmem>>, vector<1x128xf32>
    %4 = vector.broadcast %2 : vector<8x1xf32> to vector<8x128xf32>
    %5 = vector.broadcast %3 : vector<1x128xf32> to vector<8x128xf32>
    %6 = arith.mulf %4, %5 : vector<8x128xf32>
    %7 = vector.broadcast %1 : vector<1x128xf32> to vector<8x128xf32>
    %8 = arith.addf %7, %6 : vector<8x128xf32>
    %9 = vector.extract_strided_slice %0 {offsets = [0, 1], sizes = [8, 1], strides = [1, 1]} : vector<8x4xf32> to vector<8x1xf32>
    %c1 = arith.constant 1 : index
    %c0_4 = arith.constant 0 : index
    %10 = vector.load %arg2[%c1, %c0_4] : memref<7x256xf32, #tpu.memory_space<vmem>>, vector<1x128xf32>
    %11 = vector.broadcast %9 : vector<8x1xf32> to vector<8x128xf32>
    %12 = vector.broadcast %10 : vector<1x128xf32> to vector<8x128xf32>
    %13 = arith.mulf %11, %12 : vector<8x128xf32>
    %14 = arith.addf %8, %13 : vector<8x128xf32>
    %15 = vector.extract_strided_slice %0 {offsets = [0, 2], sizes = [8, 1], strides = [1, 1]} : vector<8x4xf32> to vector<8x1xf32>
    %c2 = arith.constant 2 : index
    %c0_5 = arith.constant 0 : index
    %16 = vector.load %arg2[%c2, %c0_5] : memref<7x256xf32, #tpu.memory_space<vmem>>, vector<1x128xf32>
    %17 = vector.broadcast %15 : vector<8x1xf32> to vector<8x128xf32>
    %18 = vector.broadcast %16 : vector<1x128xf32> to vector<8x128xf32>
    %19 = arith.mulf %17, %18 : vector<8x128xf32>
    %20 = arith.addf %14, %19 : vector<8x128xf32>
    %21 = vector.extract_strided_slice %0 {offsets = [0, 3], sizes = [8, 1], strides = [1, 1]} : vector<8x4xf32> to vector<8x1xf32>
    %c3 = arith.constant 3 : index
    %c0_6 = arith.constant 0 : index
    %22 = vector.load %arg2[%c3, %c0_6] : memref<7x256xf32, #tpu.memory_space<vmem>>, vector<1x128xf32>
    %23 = vector.broadcast %21 : vector<8x1xf32> to vector<8x128xf32>
    %24 = vector.broadcast %22 : vector<1x128xf32> to vector<8x128xf32>
    %25 = arith.mulf %23, %24 : vector<8x128xf32>
    %26 = arith.addf %20, %25 : vector<8x128xf32>
    %cst = arith.constant 0.000000e+00 : f32
    %27 = vector.broadcast %cst : f32 to vector<8x128xf32>
    %28 = arith.maximumf %26, %27 : vector<8x128xf32>
    %29 = arith.truncf %28 : vector<8x128xf32> to vector<8x128xbf16>
    %c0_7 = arith.constant 0 : index
    %c0_8 = arith.constant 0 : index
    %30 = vector.load %arg3[%c0_7, %c0_8] : memref<128x256xbf16, #tpu.memory_space<vmem>>, vector<128x256xbf16>
    %cst_9 = arith.constant dense<0.000000e+00> : vector<8x256xf32>
    %31 = tpu.matmul %29, %30, %cst_9 {dimension_numbers = #tpu.dot_dimension_numbers<[1], [0], [0], [1], [0, 0, 1, 1], [], []>} : vector<8x128xbf16>, vector<128x256xbf16>, vector<8x256xf32> -> vector<8x256xf32>
    %c5 = arith.constant 5 : index
    %c0_10 = arith.constant 0 : index
    %32 = vector.load %arg2[%c5, %c0_10] : memref<7x256xf32, #tpu.memory_space<vmem>>, vector<1x256xf32>
    %33 = vector.broadcast %32 : vector<1x256xf32> to vector<8x256xf32>
    %34 = arith.addf %31, %33 : vector<8x256xf32>
    %cst_11 = arith.constant 0.000000e+00 : f32
    %35 = vector.broadcast %cst_11 : f32 to vector<8x256xf32>
    %36 = arith.maximumf %34, %35 : vector<8x256xf32>
    %37 = arith.truncf %36 : vector<8x256xf32> to vector<8x256xbf16>
    %c0_12 = arith.constant 0 : index
    %c0_13 = arith.constant 0 : index
    %38 = vector.load %arg4[%c0_12, %c0_13] : memref<256x2xbf16, #tpu.memory_space<vmem>>, vector<256x2xbf16>
    %cst_14 = arith.constant dense<0.000000e+00> : vector<8x2xf32>
    %39 = tpu.matmul %37, %38, %cst_14 {dimension_numbers = #tpu.dot_dimension_numbers<[1], [0], [0], [1], [0, 0, 1, 1], [], []>} : vector<8x256xbf16>, vector<256x2xbf16>, vector<8x2xf32> -> vector<8x2xf32>
    %c6 = arith.constant 6 : index
    %c0_15 = arith.constant 0 : index
    %40 = vector.load %arg2[%c6, %c0_15] : memref<7x256xf32, #tpu.memory_space<vmem>>, vector<1x2xf32>
    %41 = vector.broadcast %40 : vector<1x2xf32> to vector<8x2xf32>
    %42 = arith.addf %39, %41 : vector<8x2xf32>
    %cst_16 = arith.constant dense<0xFF800000> : vector<8xf32>
    %43 = vector.multi_reduction <maximumf>, %42, %cst_16 [1] : vector<8x2xf32> to vector<8xf32>
    %44 = vector.shape_cast %43 : vector<8xf32> to vector<8x1xf32>
    %45 = vector.broadcast %44 : vector<8x1xf32> to vector<8x2xf32>
    %46 = arith.subf %42, %45 : vector<8x2xf32>
    %47 = math.exp %46 : vector<8x2xf32>
    %cst_17 = arith.constant dense<0.000000e+00> : vector<8xf32>
    %48 = vector.multi_reduction <add>, %47, %cst_17 [1] : vector<8x2xf32> to vector<8xf32>
    %49 = vector.shape_cast %48 : vector<8xf32> to vector<8x1xf32>
    %50 = tpu.reciprocal %49 {approx = true} : vector<8x1xf32> -> vector<8x1xf32>
    %51 = vector.broadcast %50 : vector<8x1xf32> to vector<8x2xf32>
    %52 = arith.mulf %47, %51 : vector<8x2xf32>
    %c0_18 = arith.constant 0 : index
    %c0_19 = arith.constant 0 : index
    %53 = vector.load %arg5[%c0_18, %c0_19] : memref<8x2xf32, #tpu.memory_space<vmem>>, vector<8x2xf32>
    tpu.vector_store %arg5[%c0_18, %c0_19], %52 {strides = array<i32>} : memref<8x2xf32, #tpu.memory_space<vmem>>, vector<8x2xf32>,
    return
  }
  func.func @transform_0(%arg0: i32) -> (i32, i32) {
    %c0_i32 = arith.constant 0 : i32
    %c0_i32_0 = arith.constant 0 : i32
    return %arg0, %c0_i32 : i32, i32
  }
  func.func @transform_1(%arg0: i32) -> (i32, i32) {
    %c0_i32 = arith.constant 0 : i32
    %c0_i32_0 = arith.constant 0 : i32
    %c0_i32_1 = arith.constant 0 : i32
    return %c0_i32, %c0_i32_0 : i32, i32
  }
  func.func @transform_2(%arg0: i32) -> (i32, i32) {
    %c0_i32 = arith.constant 0 : i32
    %c0_i32_0 = arith.constant 0 : i32
    %c0_i32_1 = arith.constant 0 : i32
    return %c0_i32, %c0_i32_0 : i32, i32
  }
  func.func @transform_3(%arg0: i32) -> (i32, i32) {
    %c0_i32 = arith.constant 0 : i32
    %c0_i32_0 = arith.constant 0 : i32
    %c0_i32_1 = arith.constant 0 : i32
    return %c0_i32, %c0_i32_0 : i32, i32
  }
  func.func @transform_4(%arg0: i32) -> (i32, i32) {
    %c0_i32 = arith.constant 0 : i32
    %c0_i32_0 = arith.constant 0 : i32
    return %arg0, %c0_i32 : i32, i32
  }
}

</mosaic_0001>

<llo_original>
// kernel: tpu_custom_call.1
$region0: #{tpu_custom_call.1}
  #allocation0 [shape = 'u32[]', space=smem, size = 0x4, offset = 0x4, fixed_abs, tag = 'smem constant byte address 0x4 - core index']
  #allocation1 [shape = 'u32[72,128]{1,0:T(1,128)}', space=vmem, size = 0x9000, scoped, tag = 'internal scratch']
  %s0 = inlined_call_operand.vmem [shape: f32[8,4], index: 0, kind: input, shape index: {}]
  %s1 = inlined_call_operand.hbm [shape: f32[7,256], index: 1, kind: input, shape index: {}]
  %s2 = inlined_call_operand.vmem [shape: bf16[128,256], index: 2, kind: input, shape index: {}]
  %s3 = inlined_call_operand.vmem [shape: bf16[256,2], index: 3, kind: input, shape index: {}]
  %s4 = inlined_call_operand.vmem [shape: f32[8,2], index: 4, kind: output, shape index: {}]
  %s5 = sld [smem:[#allocation0]]
  $region30: #{tpu_custom_call.1} parent=0
    _
  %s7 = ssub.s32 1, %s5
  %s8 = scalar_select 0, %s7, %s5
  $region1: #{tpu_custom_call.1} parent=0
    #allocation2 [shape = 'u8[8192]{0}', space=vmem, size = 0x2000, scoped, tag = 'input window, operand 1, single buffered']
    #allocation3 [shape = 's32[1]{0}', space=sflag, size = 0x4, scoped, tag = 'scoped memory for tpu_custom_call.1']
    %9 = vsyncpa [#allocation3], 0
    // Predicated region
    $region2: #{tpu_custom_call.1} parent=1 // pred_check
      _
    $region3: #{tpu_custom_call.1} parent=1 // pred_check_branch
      %11 = sbr.rel (0) target = $region5
    $region4: #{tpu_custom_call.1} parent=1 // pred_region
      _
    $region5: #{tpu_custom_call.1} parent=1 // pred_fallthru
      _
    // Predicated region
    $region6: #{tpu_custom_call.1} parent=1 // pred_check
      _
    $region7: #{tpu_custom_call.1} parent=1 // pred_check_branch
      %13 = sbr.rel (0) target = $region9
    $region8: #{tpu_custom_call.1} parent=1 // pred_region
      %15 = vsyncadd [#allocation3], 0
      %s17 = sshll.u32 %s1, 4
      %s18 = int_to_ptr.hbm [resolvable:$true] %s17
      %s19 = sshll.u32 [#allocation2], 4
      %s20 = int_to_ptr.vmem [resolvable:$true] %s19
      %22 = dma.hbm_to_vmem [thread:$0]  %s18, 256, %s20, [#allocation3]
    $region9: #{tpu_custom_call.1} parent=1 // pred_fallthru
      _
    // Predicated region
    $region10: #{tpu_custom_call.1} parent=1 // pred_check
      _
    $region11: #{tpu_custom_call.1} parent=1 // pred_check_branch
      %24 = sbr.rel (0) target = $region13
    $region12: #{tpu_custom_call.1} parent=1 // pred_region
      _
    $region13: #{tpu_custom_call.1} parent=1 // pred_fallthru
      _
    // Predicated region
    $region14: #{tpu_custom_call.1} parent=1 // pred_check
      _
    $region15: #{tpu_custom_call.1} parent=1 // pred_check_branch
      %26 = sbr.rel (0) target = $region17
    $region16: #{tpu_custom_call.1} parent=1 // pred_region
      _
    $region17: #{tpu_custom_call.1} parent=1 // pred_fallthru
      _
    // Predicated region
    $region18: #{tpu_custom_call.1} parent=1 // pred_check
      _
    $region19: #{tpu_custom_call.1} parent=1 // pred_check_branch
      %28 = sbr.rel (0) target = $region21
    $region20: #{tpu_custom_call.1} parent=1 // pred_region
      %30 = dma.done [#allocation3], 256
    $region21: #{tpu_custom_call.1} parent=1 // pred_fallthru
      _
    %v31 = vld [vmem:[%s0] sm:$0xff]
    %v32 = vld [vmem:[#allocation2 + $0x4] ss:$0 sm:$0xff]
    %v33 = vld [vmem:[#allocation2] ss:$0 sm:$0xff]
    %35 = vset.pattern.permute.xlu0 0
    %36 = vperm.xlu0 %35, %v31
    %v37 = vpop.permute.xlu0 %36
    %v39 = vmul.f32 %v37, %v33
    %v40 = vadd.f32 %v32, %v39
    %v41 = vld [vmem:[#allocation2 + $0x1] ss:$0 sm:$0xff]
    %42 = vset.pattern.permute.xlu0 1
    %43 = vperm.xlu0 %42, %v31
    %v44 = vpop.permute.xlu0 %43
    %v46 = vmul.f32 %v44, %v41
    %v47 = vadd.f32 %v40, %v46
    %v48 = vld [vmem:[#allocation2 + $0x2] ss:$0 sm:$0xff]
    %49 = vset.pattern.permute.xlu0 2
    %50 = vperm.xlu0 %49, %v31
    %v51 = vpop.permute.xlu0 %50
    %v53 = vmul.f32 %v51, %v48
    %v54 = vadd.f32 %v47, %v53
    %v55 = vld [vmem:[#allocation2 + $0x3] ss:$0 sm:$0xff]
    %56 = vset.pattern.permute.xlu0 3
    %57 = vperm.xlu0 %56, %v31
    %v58 = vpop.permute.xlu0 %57
    %v60 = vmul.f32 %v58, %v55
    %v61 = vadd.f32 %v54, %v60
    %v62 = vmax.f32 %v61, 0.0
    %v63 = vpack.c.bf16 %v62, %v62
    %v64 = vld [vmem:[%s2] sm:$0xff]
    %v65 = vld [vmem:[%s2 + $0x8] sm:$0xff]
    %v66 = vld [vmem:[%s2 + $0x10] sm:$0xff]
    %v67 = vld [vmem:[%s2 + $0x18] sm:$0xff]
    %v68 = vld [vmem:[%s2 + $0x20] sm:$0xff]
    %v69 = vld [vmem:[%s2 + $0x28] sm:$0xff]
    %v70 = vld [vmem:[%s2 + $0x30] sm:$0xff]
    %v71 = vld [vmem:[%s2 + $0x38] sm:$0xff]
    %v72 = vld [vmem:[%s2 + $0x40] sm:$0xff]
    %v73 = vld [vmem:[%s2 + $0x48] sm:$0xff]
    %v74 = vld [vmem:[%s2 + $0x50] sm:$0xff]
    %v75 = vld [vmem:[%s2 + $0x58] sm:$0xff]
    %v76 = vld [vmem:[%s2 + $0x60] sm:$0xff]
    %v77 = vld [vmem:[%s2 + $0x68] sm:$0xff]
    %v78 = vld [vmem:[%s2 + $0x70] sm:$0xff]
    %v79 = vld [vmem:[%s2 + $0x78] sm:$0xff]
    %s80 = scalar_lea.vmem [#allocation2], 5
    %v81 = vld [vmem:[%s80] ss:$8 sm:$0x3]
    %v83 = vperm.slane %v81, 0
    %v84 = vperm.slane %v81, 1
    %v103 = vunpack.c.l.b16 %v64
    %v104 = vunpack.c.h.b16 %v64
    %v105 = vunpack.c.l.b16 %v65
    %v106 = vunpack.c.h.b16 %v65
    %v107 = vunpack.c.l.b16 %v66
    %v108 = vunpack.c.h.b16 %v66
    %v109 = vunpack.c.l.b16 %v67
    %v110 = vunpack.c.h.b16 %v67
    %v111 = vunpack.c.l.b16 %v68
    %v112 = vunpack.c.h.b16 %v68
    %v113 = vunpack.c.l.b16 %v69
    %v114 = vunpack.c.h.b16 %v69
    %v115 = vunpack.c.l.b16 %v70
    %v116 = vunpack.c.h.b16 %v70
    %v117 = vunpack.c.l.b16 %v71
    %v118 = vunpack.c.h.b16 %v71
    %v119 = vunpack.c.l.b16 %v72
    %v120 = vunpack.c.h.b16 %v72
    %v121 = vunpack.c.l.b16 %v73
    %v122 = vunpack.c.h.b16 %v73
    %v123 = vunpack.c.l.b16 %v74
    %v124 = vunpack.c.h.b16 %v74
    %v125 = vunpack.c.l.b16 %v75
    %v126 = vunpack.c.h.b16 %v75
    %v127 = vunpack.c.l.b16 %v76
    %v128 = vunpack.c.h.b16 %v76
    %v129 = vunpack.c.l.b16 %v77
    %v130 = vunpack.c.h.b16 %v77
    %v131 = vunpack.c.l.b16 %v78
    %v132 = vunpack.c.h.b16 %v78
    %v133 = vunpack.c.l.b16 %v79
    %v134 = vunpack.c.h.b16 %v79
    %v135 = vpack.c.b16 %v105, %v103
    %v136 = vpack.c.b16 %v106, %v104
    %v137 = vpack.c.b16 %v109, %v107
    %v138 = vpack.c.b16 %v110, %v108
    %v139 = vpack.c.b16 %v113, %v111
    %v140 = vpack.c.b16 %v114, %v112
    %v141 = vpack.c.b16 %v117, %v115
    %v142 = vpack.c.b16 %v118, %v116
    %v143 = vpack.c.b16 %v121, %v119
    %v144 = vpack.c.b16 %v122, %v120
    %v145 = vpack.c.b16 %v125, %v123
    %v146 = vpack.c.b16 %v126, %v124
    %v147 = vpack.c.b16 %v129, %v127
    %v148 = vpack.c.b16 %v130, %v128
    %v149 = vpack.c.b16 %v133, %v131
    %v150 = vpack.c.b16 %v134, %v132
    %167 = vmatpush.bf16.msra.mxu0 %v149
    %168 = vmatpush.bf16.msra.mxu0 %v147
    %169 = vmatpush.bf16.msra.mxu0 %v145
    %170 = vmatpush.bf16.msra.mxu0 %v143
    %171 = vmatpush.bf16.msra.mxu0 %v141
    %172 = vmatpush.bf16.msra.mxu0 %v139
    %173 = vmatpush.bf16.msra.mxu0 %v137
    %174 = vmatpush.bf16.msra.mxu0 %v135
    %175 = vmatmul.bf16.gmra.mxu0 %v63
    %v176 = vpop.f32.mrf.mxu0
    %v177 = vadd.f32 %v83, %v176
    %v178 = vpop.f32.mrf.mxu0
    %179 = vdwg.mxu0
    %180 = vmatpush.bf16.msra.mxu0 %v150
    %181 = vmatpush.bf16.msra.mxu0 %v148
    %182 = vmatpush.bf16.msra.mxu0 %v146
    %183 = vmatpush.bf16.msra.mxu0 %v144
    %184 = vmatpush.bf16.msra.mxu0 %v142
    %185 = vmatpush.bf16.msra.mxu0 %v140
    %186 = vmatpush.bf16.msra.mxu0 %v138
    %187 = vmatpush.bf16.msra.mxu0 %v136
    %188 = vmatmul.bf16.gmra.mxu0 %v63
    %v189 = vpop.f32.mrf.mxu0
    %v190 = vadd.f32 %v84, %v189
    %v191 = vpop.f32.mrf.mxu0
    %192 = vdwg.mxu0
    %v193 = vmax.f32 %v177, 0.0
    %v194 = vmax.f32 %v190, 0.0
    %v195 = vpack.c.bf16 %v193, %v193
    %v196 = vpack.c.bf16 %v194, %v194
    %v197 = vld [vmem:[%s3] sm:$0xf]
    %v198 = vld [vmem:[%s3 + $0x4] sm:$0xf]
    %v199 = vld [vmem:[%s3 + $0x8] sm:$0xf]
    %v200 = vld [vmem:[%s3 + $0xc] sm:$0xf]
    %v201 = vld [vmem:[%s3 + $0x10] sm:$0xf]
    %v202 = vld [vmem:[%s3 + $0x14] sm:$0xf]
    %v203 = vld [vmem:[%s3 + $0x18] sm:$0xf]
    %v204 = vld [vmem:[%s3 + $0x1c] sm:$0xf]
    %v205 = vld [vmem:[%s3 + $0x20] sm:$0xf]
    %v206 = vld [vmem:[%s3 + $0x24] sm:$0xf]
    %v207 = vld [vmem:[%s3 + $0x28] sm:$0xf]
    %v208 = vld [vmem:[%s3 + $0x2c] sm:$0xf]
    %v209 = vld [vmem:[%s3 + $0x30] sm:$0xf]
    %v210 = vld [vmem:[%s3 + $0x34] sm:$0xf]
    %v211 = vld [vmem:[%s3 + $0x38] sm:$0xf]
    %v212 = vld [vmem:[%s3 + $0x3c] sm:$0xf]
    %v213 = vld [vmem:[%s3 + $0x40] sm:$0xf]
    %v214 = vld [vmem:[%s3 + $0x44] sm:$0xf]
    %v215 = vld [vmem:[%s3 + $0x48] sm:$0xf]
    %v216 = vld [vmem:[%s3 + $0x4c] sm:$0xf]
    %v217 = vld [vmem:[%s3 + $0x50] sm:$0xf]
    %v218 = vld [vmem:[%s3 + $0x54] sm:$0xf]
    %v219 = vld [vmem:[%s3 + $0x58] sm:$0xf]
    %v220 = vld [vmem:[%s3 + $0x5c] sm:$0xf]
    %v221 = vld [vmem:[%s3 + $0x60] sm:$0xf]
    %v222 = vld [vmem:[%s3 + $0x64] sm:$0xf]
    %v223 = vld [vmem:[%s3 + $0x68] sm:$0xf]
    %v224 = vld [vmem:[%s3 + $0x6c] sm:$0xf]
    %v225 = vld [vmem:[%s3 + $0x70] sm:$0xf]
    %v226 = vld [vmem:[%s3 + $0x74] sm:$0xf]
    %v227 = vld [vmem:[%s3 + $0x78] sm:$0xf]
    %v228 = vld [vmem:[%s3 + $0x7c] sm:$0xf]
    %v229 = vld [vmem:[#allocation2 + $0x6] ss:$0 sm:$0xff]
    %v262 = vunpack.c.l.b16 %v197
    %v263 = vunpack.c.l.b16 %v198
    %v264 = vunpack.c.l.b16 %v199
    %v265 = vunpack.c.l.b16 %v200
    %v266 = vunpack.c.l.b16 %v201
    %v267 = vunpack.c.l.b16 %v202
    %v268 = vunpack.c.l.b16 %v203
    %v269 = vunpack.c.l.b16 %v204
    %v270 = vunpack.c.l.b16 %v205
    %v271 = vunpack.c.l.b16 %v206
    %v272 = vunpack.c.l.b16 %v207
    %v273 = vunpack.c.l.b16 %v208
    %v274 = vunpack.c.l.b16 %v209
    %v275 = vunpack.c.l.b16 %v210
    %v276 = vunpack.c.l.b16 %v211
    %v277 = vunpack.c.l.b16 %v212
    %v278 = vunpack.c.l.b16 %v213
    %v279 = vunpack.c.l.b16 %v214
    %v280 = vunpack.c.l.b16 %v215
    %v281 = vunpack.c.l.b16 %v216
    %v282 = vunpack.c.l.b16 %v217
    %v283 = vunpack.c.l.b16 %v218
    %v284 = vunpack.c.l.b16 %v219
    %v285 = vunpack.c.l.b16 %v220
    %v286 = vunpack.c.l.b16 %v221
    %v287 = vunpack.c.l.b16 %v222
    %v288 = vunpack.c.l.b16 %v223
    %v289 = vunpack.c.l.b16 %v224
    %v290 = vunpack.c.l.b16 %v225
    %v291 = vunpack.c.l.b16 %v226
    %v292 = vunpack.c.l.b16 %v227
    %v293 = vunpack.c.l.b16 %v228
    %v294 = vpack.c.b16 %v263, %v262
    %v295 = vpack.c.b16 %v265, %v264
    %v296 = vpack.c.b16 %v267, %v266
    %v297 = vpack.c.b16 %v269, %v268
    %v298 = vpack.c.b16 %v271, %v270
    %v299 = vpack.c.b16 %v273, %v272
    %v300 = vpack.c.b16 %v275, %v274
    %v301 = vpack.c.b16 %v277, %v276
    %v302 = vpack.c.b16 %v279, %v278
    %v303 = vpack.c.b16 %v281, %v280
    %v304 = vpack.c.b16 %v283, %v282
    %v305 = vpack.c.b16 %v285, %v284
    %v306 = vpack.c.b16 %v287, %v286
    %v307 = vpack.c.b16 %v289, %v288
    %v308 = vpack.c.b16 %v291, %v290
    %v309 = vpack.c.b16 %v293, %v292
    %326 = vmatpush.bf16.msra.mxu0 %v301
    %327 = vmatpush.bf16.msra.mxu0 %v300
    %328 = vmatpush.bf16.msra.mxu0 %v299
    %329 = vmatpush.bf16.msra.mxu0 %v298
    %330 = vmatpush.bf16.msra.mxu0 %v297
    %331 = vmatpush.bf16.msra.mxu0 %v296
    %332 = vmatpush.bf16.msra.mxu0 %v295
    %333 = vmatpush.bf16.msra.mxu0 %v294
    %334 = vmatmul.bf16.gmra.mxu0 %v195
    %v335 = vpop.f32.mrf.mxu0
    %v336 = vadd.f32 %v229, %v335
    %v337 = vpop.f32.mrf.mxu0
    %338 = vdwg.mxu0
    %339 = vmatpush.bf16.msra.mxu0 %v309
    %340 = vmatpush.bf16.msra.mxu0 %v308
    %341 = vmatpush.bf16.msra.mxu0 %v307
    %342 = vmatpush.bf16.msra.mxu0 %v306
    %343 = vmatpush.bf16.msra.mxu0 %v305
    %344 = vmatpush.bf16.msra.mxu0 %v304
    %345 = vmatpush.bf16.msra.mxu0 %v303
    %346 = vmatpush.bf16.msra.mxu0 %v302
    %347 = vmatmul.bf16.gmra.mxu0 %v196
    %v348 = vpop.f32.mrf.mxu0
    %v349 = vadd.f32 %v336, %v348
    %v350 = vpop.f32.mrf.mxu0
    %351 = vdwg.mxu0
    %vm352 = vcmask 15360
    %v353 = vsel %vm352, %v349, -inf
    %354 = vmax.xlane.f32.xlu0 %v353
    %v355 = vpop.xlane.xlu0 %354
    %v356 = vsub.f32 %v349, %v355
    %v357 = vmul.f32 %v356, 1.442695
    %v358 = vpow.pop %v357
    %v359 = vsel %vm352, %v358, 0.0
    %360 = vadd.xlane.f32.xlu0 %v359
    %v361 = vpop.xlane.xlu0 %360
    %v362 = vrcp.pop %v361
    %v363 = vmul.f32 %v358, %v362
    %364 = vst.msk [vmem:[%s4] sm:$0xff] %vm352, %v363
    // Predicated region
    $region22: #{tpu_custom_call.1} parent=1 // pred_check
      _
    $region23: #{tpu_custom_call.1} parent=1 // pred_check_branch
      %366 = sbr.rel (0) target = $region25
    $region24: #{tpu_custom_call.1} parent=1 // pred_region
      _
    $region25: #{tpu_custom_call.1} parent=1 // pred_fallthru
      _
    // Predicated region
    $region26: #{tpu_custom_call.1} parent=1 // pred_check
      _
    $region27: #{tpu_custom_call.1} parent=1 // pred_check_branch
      %368 = sbr.rel (0) target = $region29
    $region28: #{tpu_custom_call.1} parent=1 // pred_region
      _
    $region29: #{tpu_custom_call.1} parent=1 // pred_fallthru
      _
    %369 = vsyncpa [#allocation3], 1

</llo_original>
